<compile_context>
chip_gen: v7x
topology: tpu7x:2x2x1
jax: 0.10.0
libtpu: 0.0.40
codegen_flags: <defaults>
</compile_context>

<pallas_src>
import jax
import jax.numpy as jnp
from jax.experimental import pallas as pl
from jax.experimental.pallas import tpu as pltpu

EPS_1 = 1.000001          # matches the 1.000001 constant in the PyTorch module
_LANES = 128
_SUBLANES = 8
_MAX_TILE_ROWS = 4096     # (4096,128) f32 = 2 MiB/input/buffer; 2 in x 2 bufs = 8 MiB
_PAD_LOGIT = -1.0e4       # exp(-1e4) == 0 and fits f16/bf16/f32 -> bce == 0 -> loss == 0


def _round_up(x, m):
    return ((x + m - 1) // m) * m


def _cdiv(a, b):
    return -(-a // b)


def _make_focal_kernel(gamma, alpha, binary_targets, n_inner, tr, rows, need_mask):
    """Build the kernel with all static parameters folded in at trace time."""

    def kernel(x_ref, t_ref, o_ref, acc_ref):
        i = pl.program_id(0)
        j = pl.program_id(1)

        @pl.when(j == 0)
        def _():
            acc_ref[...] = jnp.zeros_like(acc_ref)

        x = x_ref[...].astype(jnp.float32)
        t = t_ref[...].astype(jnp.float32)

        # BCEWithLogitsLoss(reduction='none'), numerically stable form:
        #   bce = max(x, 0) - x*t + log1p(exp(-|x|))
        e = jnp.exp(-jnp.abs(x))                       # shared with exp(-bce)
        bce = jnp.maximum(x, 0.0) - x * t + jnp.log1p(e)

        # p_t = exp(-bce).  For binary targets use the sigmoid-select form to
        # avoid a second EUP exp per element (exact for t in {0, 1}).
        if binary_targets:
            num = jnp.where((x >= 0.0) == (t >= 0.5), 1.0, e)
            p_t = num / (1.0 + e)
        else:
            p_t = jnp.exp(-bce)

        base = EPS_1 - p_t                             # > 0, sqrt/pow are safe
        if gamma == 0.5:
            mod = jnp.sqrt(base)                       # EUP sqrt, not exp(g*log)
        elif gamma == 1.0:
            mod = base
        elif gamma == 1.5:
            mod = base * jnp.sqrt(base)
        elif gamma == 2.0:
            mod = base * base
        else:
            mod = base ** gamma
        if alpha != 1.0:
            mod = alpha * mod
        loss = bce * mod

        if need_mask:
            # Partial / duplicated edge blocks: zero every row past the true
            # array extent (covers garbage OOB reads and clamped re-reads).
            row0 = (i * n_inner + j) * tr
            row_idx = jax.lax.broadcasted_iota(jnp.int32, loss.shape, 0)
            loss = jnp.where(row0 + row_idx < rows, loss, 0.0)

        # Vector (8,128) accumulate on VPU add slots; the cross-sublane reduce
        # is deferred to the tiny wrapper-side sum.
        acc_ref[...] += jnp.sum(loss.reshape(-1, _SUBLANES, _LANES), axis=0)

        @pl.when(j == pl.num_programs(1) - 1)
        def _():
            o_ref[...] = acc_ref[...].reshape(o_ref.shape)

    return kernel


def focal_loss(logits, targets, *, gamma=0.5, alpha=1.0, reduction="mean",
               binary_targets=True):
    """FocalLoss(nn.BCEWithLogitsLoss(), gamma, alpha) with 'mean'/'sum'.

    binary_targets=True uses an exact single-exp rewrite of exp(-bce) valid
    for 0/1 labels; pass binary_targets=False for soft labels.
    """
    assert logits.shape == targets.shape
    total = int(logits.size)

    xf = logits.reshape(-1)
    tf = targets.reshape(-1)

    # Only ragged sizes get a (minimal) pad to one (8,128) tile; padded logits
    # of -1e4 with target 0 give bce == 0 exactly -> zero loss contribution.
    padded_total = _round_up(total, _SUBLANES * _LANES)
    pad = padded_total - total
    if pad:
        xf = jnp.pad(xf, (0, pad), constant_values=_PAD_LOGIT)
        tf = jnp.pad(tf, (0, pad), constant_values=0)
    rows = padded_total // _LANES
    x2 = xf.reshape(rows, _LANES)                      # lane-dense, no tile rounding
    t2 = tf.reshape(rows, _LANES)

    # Leading "parallel" axis of 2 for potential TensorCore sharding on v7x;
    # sequential outer loop on single-core v5e/v6e.  tr is adaptive so small
    # and mid-sized inputs don't over-DMA.
    n_outer = 2 if rows >= 2 * _SUBLANES else 1
    tr = min(_MAX_TILE_ROWS, _round_up(_cdiv(rows, n_outer), _SUBLANES))
    n_blocks = _cdiv(rows, tr)
    n_inner = _cdiv(n_blocks, n_outer)
    need_mask = n_outer * n_inner * tr > rows

    if n_outer * n_inner == n_blocks:
        def idx_map(i, j):
            return (i * n_inner + j, 0)
    else:
        # Clamp over-allocated grid steps onto the last valid block; their
        # contribution is zeroed by the in-kernel row mask.
        def idx_map(i, j):
            return (jnp.minimum(i * n_inner + j, n_blocks - 1), 0)

    bytes_x = jnp.dtype(logits.dtype).itemsize
    bytes_t = jnp.dtype(targets.dtype).itemsize
    cost = pl.CostEstimate(
        flops=14 * padded_total,
        transcendentals=(3 if binary_targets else 4) * padded_total,
        bytes_accessed=padded_total * (bytes_x + bytes_t)
        + n_outer * _SUBLANES * _LANES * 4,
    )

    partials = pl.pallas_call(
        _make_focal_kernel(float(gamma), float(alpha), binary_targets,
                           n_inner, tr, rows, need_mask),
        out_shape=jax.ShapeDtypeStruct((n_outer, _SUBLANES, _LANES), jnp.float32),
        grid_spec=pltpu.PrefetchScalarGridSpec(
            num_scalar_prefetch=0,
            grid=(n_outer, n_inner),
            in_specs=[
                pl.BlockSpec((tr, _LANES), idx_map),
                pl.BlockSpec((tr, _LANES), idx_map),
            ],
            out_specs=pl.BlockSpec((1, _SUBLANES, _LANES), lambda i, j: (i, 0, 0)),
            scratch_shapes=[pltpu.VMEM((_SUBLANES, _LANES), jnp.float32)],
        ),
        compiler_params=pltpu.CompilerParams(
            dimension_semantics=("parallel", "arbitrary"),
        ),
        cost_estimate=cost,
    )(x2, t2)

    loss_sum = jnp.sum(partials)
    if reduction == "mean":
        return loss_sum / jnp.float32(total)
    elif reduction == "sum":
        return loss_sum
    else:
        # TODO(synk): reduction='none' (per-element loss map) not implemented
        # in the Pallas path; only 'mean'/'sum' are supported here.
        raise NotImplementedError("reduction must be 'mean' or 'sum'")


def _reference(logits, targets, gamma=0.5, alpha=1.0):
    x = logits.astype(jnp.float32)
    t = targets.astype(jnp.float32)
    bce = jnp.maximum(x, 0.0) - x * t + jnp.log1p(jnp.exp(-jnp.abs(x)))
    loss = bce * (alpha * (EPS_1 - jnp.exp(-bce)) ** gamma)
    return loss.mean()


if __name__ == "__main__":
    key = jax.random.PRNGKey(0)
    k1, k2, k3, k4, k5, k6, k7 = jax.random.split(key, 7)

    # YOLO-head-like tensors: (batch=2, channels=4, H=16, W=16) -> 2048 elems
    # (multiple of 1024 -> no pad copy at all).
    logits = jax.random.normal(k1, (2, 4, 16, 16), dtype=jnp.float32)
    targets = (jax.random.uniform(k2, (2, 4, 16, 16)) > 0.5).astype(jnp.float32)
    out = jax.block_until_ready(focal_loss(logits, targets))
    ref = _reference(logits, targets)
    assert jnp.allclose(out, ref, atol=1e-5, rtol=1e-5), (out, ref)

    # Ragged total (378 elements): exercises the minimal-pad path.
    logits2 = jax.random.normal(k3, (2, 3, 7, 9), dtype=jnp.float32)
    targets2 = (jax.random.uniform(k4, (2, 3, 7, 9)) > 0.5).astype(jnp.float32)
    out2 = jax.block_until_ready(focal_loss(logits2, targets2))
    ref2 = _reference(logits2, targets2)
    assert jnp.allclose(out2, ref2, atol=1e-5, rtol=1e-5), (out2, ref2)

    # 3072 elements = 24 rows: no pad, but the last grid block is partial ->
    # exercises the in-kernel row mask over garbage out-of-bounds rows.
    logits3 = jax.random.normal(k5, (2, 4, 16, 24), dtype=jnp.float32)
    targets3 = (jax.random.uniform(k6, (2, 4, 16, 24)) > 0.5).astype(jnp.float32)
    out3 = jax.block_until_ready(focal_loss(logits3, targets3))
    ref3 = _reference(logits3, targets3)
    assert jnp.allclose(out3, ref3, atol=1e-5, rtol=1e-5), (out3, ref3)

    # Soft (non-binary) labels via the exact exp(-bce) path.
    soft_t = jax.random.uniform(k7, (2, 4, 16, 16), dtype=jnp.float32)
    out4 = jax.block_until_ready(focal_loss(logits, soft_t, binary_targets=False))
    ref4 = _reference(logits, soft_t)
    assert jnp.allclose(out4, ref4, atol=1e-5, rtol=1e-5), (out4, ref4)

    print("KERNEL_OK")
</pallas_src>

<mosaic_0001>
module attributes {stable_mosaic.version = 11 : i64} {
  func.func @kernel(%arg0: i32, %arg1: i32, %arg2: memref<8x128xf32, #tpu.memory_space<vmem>>, %arg3: memref<8x128xf32, #tpu.memory_space<vmem>>, %arg4: memref<1x8x128xf32, #tpu.memory_space<vmem>>, %arg5: memref<8x128xf32, #tpu.memory_space<vmem>>) attributes {dimension_semantics = [#tpu.dimension_semantics<parallel>, #tpu.dimension_semantics<arbitrary>], iteration_bounds = array<i64: 2, 1>, scalar_prefetch = 0 : i64, scratch_operands = 1 : i64, tpu.core_type = #tpu.core_type<tc>, window_params = [{transform_indices = @transform_0, window_bounds = array<i64: 8, 128>}, {transform_indices = @transform_1, window_bounds = array<i64: 8, 128>}, {transform_indices = @transform_2, window_bounds = array<i64: 1, 8, 128>}]} {
    %c0_i32 = arith.constant 0 : i32
    %0 = arith.cmpi eq, %arg1, %c0_i32 : i32
    %1 = arith.extui %0 : i1 to i32
    %c0_i32_0 = arith.constant 0 : i32
    %2 = arith.cmpi ne, %1, %c0_i32_0 : i32
    scf.if %2 {
      %cst_18 = arith.constant 0.000000e+00 : f32
      %38 = vector.broadcast %cst_18 : f32 to vector<8x128xf32>
      %c0_19 = arith.constant 0 : index
      %c0_20 = arith.constant 0 : index
      %39 = vector.load %arg5[%c0_19, %c0_20] : memref<8x128xf32, #tpu.memory_space<vmem>>, vector<8x128xf32>
      tpu.vector_store %arg5[%c0_19, %c0_20], %38 {strides = array<i32>} : memref<8x128xf32, #tpu.memory_space<vmem>>, vector<8x128xf32>,
    } else {
    }
    %c0 = arith.constant 0 : index
    %c0_1 = arith.constant 0 : index
    %3 = vector.load %arg2[%c0, %c0_1] : memref<8x128xf32, #tpu.memory_space<vmem>>, vector<8x128xf32>
    %c0_2 = arith.constant 0 : index
    %c0_3 = arith.constant 0 : index
    %4 = vector.load %arg3[%c0_2, %c0_3] : memref<8x128xf32, #tpu.memory_space<vmem>>, vector<8x128xf32>
    %5 = math.absf %3 : vector<8x128xf32>
    %cst = arith.constant 0.000000e+00 : f32
    %6 = vector.broadcast %cst : f32 to vector<8x128xf32>
    %7 = arith.subf %6, %5 : vector<8x128xf32>
    %8 = math.exp %7 : vector<8x128xf32>
    %cst_4 = arith.constant 0.000000e+00 : f32
    %9 = vector.broadcast %cst_4 : f32 to vector<8x128xf32>
    %10 = arith.maximumf %3, %9 : vector<8x128xf32>
    %11 = arith.mulf %3, %4 : vector<8x128xf32>
    %12 = arith.subf %10, %11 : vector<8x128xf32>
    %13 = math.log1p %8 : vector<8x128xf32>
    %14 = arith.addf %12, %13 : vector<8x128xf32>
    %cst_5 = arith.constant 0.000000e+00 : f32
    %15 = vector.broadcast %cst_5 : f32 to vector<8x128xf32>
    %16 = arith.cmpf oge, %3, %15 : vector<8x128xf32>
    %cst_6 = arith.constant 5.000000e-01 : f32
    %17 = vector.broadcast %cst_6 : f32 to vector<8x128xf32>
    %18 = arith.cmpf oge, %4, %17 : vector<8x128xf32>
    %19 = arith.xori %16, %18 : vector<8x128xi1>
    %cst_7 = arith.constant dense<true> : vector<8x128xi1>
    %20 = arith.xori %19, %cst_7 : vector<8x128xi1>
    %cst_8 = arith.constant 1.000000e+00 : f32
    %21 = vector.broadcast %cst_8 : f32 to vector<8x128xf32>
    %22 = arith.select %20, %21, %8 : vector<8x128xi1>, vector<8x128xf32>
    %cst_9 = arith.constant 1.000000e+00 : f32
    %23 = vector.broadcast %cst_9 : f32 to vector<8x128xf32>
    %24 = arith.addf %23, %8 : vector<8x128xf32>
    %25 = arith.divf %22, %24 : vector<8x128xf32>
    %cst_10 = arith.constant 1.00000095 : f32
    %26 = vector.broadcast %cst_10 : f32 to vector<8x128xf32>
    %27 = arith.subf %26, %25 : vector<8x128xf32>
    %28 = math.sqrt %27 : vector<8x128xf32>
    %29 = arith.mulf %14, %28 : vector<8x128xf32>
    %c0_11 = arith.constant 0 : index
    %c0_12 = arith.constant 0 : index
    %30 = vector.load %arg5[%c0_11, %c0_12] : memref<8x128xf32, #tpu.memory_space<vmem>>, vector<8x128xf32>
    %31 = vector.shape_cast %29 : vector<8x128xf32> to vector<1x8x128xf32>
    %cst_13 = arith.constant dense<0.000000e+00> : vector<8x128xf32>
    %32 = vector.multi_reduction <add>, %31, %cst_13 [0] : vector<1x8x128xf32> to vector<8x128xf32>
    %33 = arith.addf %30, %32 : vector<8x128xf32>
    %c0_14 = arith.constant 0 : index
    %c0_15 = arith.constant 0 : index
    %34 = vector.load %arg5[%c0_14, %c0_15] : memref<8x128xf32, #tpu.memory_space<vmem>>, vector<8x128xf32>
    tpu.vector_store %arg5[%c0_14, %c0_15], %33 {strides = array<i32>} : memref<8x128xf32, #tpu.memory_space<vmem>>, vector<8x128xf32>,
    %c0_i32_16 = arith.constant 0 : i32
    %35 = arith.cmpi eq, %arg1, %c0_i32_16 : i32
    %36 = arith.extui %35 : i1 to i32
    %c0_i32_17 = arith.constant 0 : i32
    %37 = arith.cmpi ne, %36, %c0_i32_17 : i32
    scf.if %37 {
      %c0_18 = arith.constant 0 : index
      %c0_19 = arith.constant 0 : index
      %38 = vector.load %arg5[%c0_18, %c0_19] : memref<8x128xf32, #tpu.memory_space<vmem>>, vector<8x128xf32>
      %39 = vector.shape_cast %38 : vector<8x128xf32> to vector<1x8x128xf32>
      %c0_20 = arith.constant 0 : index
      %c0_21 = arith.constant 0 : index
      %c0_22 = arith.constant 0 : index
      %40 = vector.load %arg4[%c0_20, %c0_21, %c0_22] : memref<1x8x128xf32, #tpu.memory_space<vmem>>, vector<1x8x128xf32>
      tpu.vector_store %arg4[%c0_20, %c0_21, %c0_22], %39 {strides = array<i32>} : memref<1x8x128xf32, #tpu.memory_space<vmem>>, vector<1x8x128xf32>,
    } else {
    }
    return
  }
  func.func @transform_0(%arg0: i32, %arg1: i32) -> (i32, i32) {
    %c1_i32 = arith.constant 1 : i32
    %0 = arith.muli %arg0, %c1_i32 : i32
    %1 = arith.addi %0, %arg1 : i32
    %c0_i32 = arith.constant 0 : i32
    %c0_i32_0 = arith.constant 0 : i32
    return %1, %c0_i32 : i32, i32
  }
  func.func @transform_1(%arg0: i32, %arg1: i32) -> (i32, i32) {
    %c1_i32 = arith.constant 1 : i32
    %0 = arith.muli %arg0, %c1_i32 : i32
    %1 = arith.addi %0, %arg1 : i32
    %c0_i32 = arith.constant 0 : i32
    %c0_i32_0 = arith.constant 0 : i32
    return %1, %c0_i32 : i32, i32
  }
  func.func @transform_2(%arg0: i32, %arg1: i32) -> (i32, i32, i32) {
    %c0_i32 = arith.constant 0 : i32
    %c0_i32_0 = arith.constant 0 : i32
    %c0_i32_1 = arith.constant 0 : i32
    return %arg0, %c0_i32, %c0_i32_0 : i32, i32, i32
  }
}

</mosaic_0001>

<llo_original>
// kernel: tpu_custom_call.1
$region0: #{tpu_custom_call.1}
  #allocation0 [shape = 'u32[]', space=smem, size = 0x4, offset = 0x4, fixed_abs, tag = 'smem constant byte address 0x4 - core index']
  #allocation1 [shape = 'u32[144,128]{1,0:T(1,128)}', space=vmem, size = 0x12000, scoped, tag = 'internal scratch']
  #allocation2 [shape = 'f32[8,128]{1,0:T(8,128)}', space=vmem, size = 0x1000, scoped, tag = 'scratch operand']
  %s0 = inlined_call_operand.hbm [shape: f32[16,128], index: 0, kind: input, shape index: {}]
  %s1 = inlined_call_operand.hbm [shape: f32[16,128], index: 1, kind: input, shape index: {}]
  %s2 = inlined_call_operand.hbm [shape: f32[2,8,128], index: 2, kind: output, shape index: {}]
  %s3 = sld [smem:[#allocation0]]
  $region57: #{tpu_custom_call.1} parent=0
    _
  %s5 = ssub.s32 1, %s3
  %s6 = scalar_select 0, %s5, %s3
  $region1: #{tpu_custom_call.1} parent=0
    #allocation3 [shape = 'u8[8192]{0}', space=vmem, size = 0x2000, scoped, tag = 'input window, operand 0']
    #allocation4 [shape = 's32[2]{0}', space=sflag, size = 0x8, scoped, tag = 'scoped memory for tpu_custom_call.1']
    #allocation5 [shape = 's32[2]{0}', space=sflag, size = 0x8, scoped, tag = 'scoped memory for tpu_custom_call.1']
    #allocation6 [shape = 'u8[8192]{0}', space=vmem, size = 0x2000, scoped, tag = 'input window, operand 1']
    #allocation7 [shape = 's32[2]{0}', space=sflag, size = 0x8, scoped, tag = 'scoped memory for tpu_custom_call.1']
    #allocation8 [shape = 'u8[8192]{0}', space=vmem, size = 0x2000, scoped, tag = 'output window, operand 0']
    %7 = vsyncpa [#allocation4], 0
    %s8 = scalar_lea.sflag [#allocation4], 1
    %9 = vsyncpa %s8, 0
    %10 = vsyncpa [#allocation7], 0
    %s11 = scalar_lea.sflag [#allocation7], 1
    %12 = vsyncpa %s11, 0
    %13 = vsyncpa [#allocation5], 0
    %s14 = scalar_lea.sflag [#allocation5], 1
    %15 = vsyncpa %s14, 0
    loop: start=0, step=1, limit=4
    $region2: #{tpu_custom_call.1} parent=1 // loop_pre_header
      _
    $region3: #{tpu_custom_call.1} parent=1 // loop_header
      %s17 = sphi 0, %s21
      %p18 = scmp.ge.s32.totalorder %s17, 4
      %s24 = sphi 0, %s36
      %s25 = sphi 0, %s32
      %s26 = sphi 0, %s24
      %s27 = sphi 0, %s25
      %s28 = sphi 0, %s26
      %s29 = sphi 0, %s27
      %s41 = sphi 0, %s43
      %s44 = sphi 0, %s41
      %s45 = sphi 0, %s44
      %s61 = sphi 0, %s45
      %s69 = sphi 0, %s71
      %s72 = sphi 0, %s69
      %s73 = sphi 0, %s72
      %s89 = sphi 0, %s73
      %s95 = sphi 0, %s97
      %s98 = sphi 0, %s95
      %s99 = sphi 0, %s98
      %s115 = sphi 0, %s99
    $region4: #{tpu_custom_call.1} parent=1 // loop_header_branch
      %20 = sbr.rel (%p18) target = $region8
    $region5: #{tpu_custom_call.1} parent=1 // loop_body
      %s22 = ssub.s32 %s17, 1
      %s23 = ssub.s32 %s17, 2
      %s30 = sadd.s32 1, %s25
      %p31 = scmp.ge.s32.totalorder %s30, 1
      %s32 = scalar_select %p31, 0, %s30
      %s33 = sadd.s32 1, %s24
      %s34 = scalar_select %p31, %s33, %s24
      %p35 = scmp.ge.s32.totalorder %s34, 2
      %s36 = scalar_select %p35, 0, %s34
      %s37 = sadd.s32 %s24, %s25
      %s38 = sadd.s32 %s36, %s32
      %s39 = ssub.s32 %s37, %s38
      %p40 = scmp.eq.s32.totalorder %s39, 0
      %s42 = sadd.s32 %s41, 1
      %s43 = scalar_select %p40, %s41, %s42
      %p46 = pneg %p40
      %p47 = scmp.eq.s32.totalorder %s17, 1
      %p48 = por %p46, %p47
      %p49 = scmp.ne.s32.totalorder %s41, %s44
      %p50 = scmp.eq.s32.totalorder %s17, 0
      %p51 = por %p49, %p50
      %p52 = scmp.ne.s32.totalorder %s41, %s44
      %p53 = scmp.eq.s32.totalorder %s22, 1
      %p54 = por %p52, %p53
      %p55 = scmp.ne.s32.totalorder %s44, %s45
      %p56 = scmp.eq.s32.totalorder %s22, 0
      %p57 = por %p55, %p56
      %p58 = scmp.ne.s32.totalorder %s44, %s45
      %p59 = scmp.eq.s32.totalorder %s23, 1
      %p60 = por %p58, %p59
      %p62 = scmp.ne.s32.totalorder %s45, %s61
      %p63 = scmp.eq.s32.totalorder %s23, 0
      %p64 = por %p62, %p63
      %s65 = sadd.s32 %s24, %s25
      %s66 = sadd.s32 %s36, %s32
      %s67 = ssub.s32 %s65, %s66
      %p68 = scmp.eq.s32.totalorder %s67, 0
      %s70 = sadd.s32 %s69, 1
      %s71 = scalar_select %p68, %s69, %s70
      %p74 = pneg %p68
      %p75 = scmp.eq.s32.totalorder %s17, 1
      %p76 = por %p74, %p75
      %p77 = scmp.ne.s32.totalorder %s69, %s72
      %p78 = scmp.eq.s32.totalorder %s17, 0
      %p79 = por %p77, %p78
      %p80 = scmp.ne.s32.totalorder %s69, %s72
      %p81 = scmp.eq.s32.totalorder %s22, 1
      %p82 = por %p80, %p81
      %p83 = scmp.ne.s32.totalorder %s72, %s73
      %p84 = scmp.eq.s32.totalorder %s22, 0
      %p85 = por %p83, %p84
      %p86 = scmp.ne.s32.totalorder %s72, %s73
      %p87 = scmp.eq.s32.totalorder %s23, 1
      %p88 = por %p86, %p87
      %p90 = scmp.ne.s32.totalorder %s73, %s89
      %p91 = scmp.eq.s32.totalorder %s23, 0
      %p92 = por %p90, %p91
      %s93 = ssub.s32 %s24, %s36
      %p94 = scmp.eq.s32.totalorder %s93, 0
      %s96 = sadd.s32 %s95, 1
      %s97 = scalar_select %p94, %s95, %s96
      %p100 = pneg %p94
      %p101 = scmp.eq.s32.totalorder %s17, 1
      %p102 = por %p100, %p101
      %p103 = scmp.ne.s32.totalorder %s95, %s98
      %p104 = scmp.eq.s32.totalorder %s17, 0
      %p105 = por %p103, %p104
      %p106 = scmp.ne.s32.totalorder %s95, %s98
      %p107 = scmp.eq.s32.totalorder %s22, 1
      %p108 = por %p106, %p107
      %p109 = scmp.ne.s32.totalorder %s98, %s99
      %p110 = scmp.eq.s32.totalorder %s22, 0
      %p111 = por %p109, %p110
      %p112 = scmp.ne.s32.totalorder %s98, %s99
      %p113 = scmp.eq.s32.totalorder %s23, 1
      %p114 = por %p112, %p113
      %p116 = scmp.ne.s32.totalorder %s99, %s115
      %p117 = scmp.eq.s32.totalorder %s23, 0
      %p118 = por %p116, %p117
      %p119 = scmp.le.s32.totalorder 1, %s17
      %p120 = scmp.lt.s32.totalorder %s17, 3
      %p121 = pnand %p119, %p120
      %p122 = pneg %p121
      // Predicated region
      $region9: #{tpu_custom_call.1} parent=5 // pred_check
        _
      $region10: #{tpu_custom_call.1} parent=5 // pred_check_branch
        %124 = sbr.rel (%p121) target = $region12
      $region11: #{tpu_custom_call.1} parent=5 // pred_region
        %s125 = ssub.s32 %s17, 1
      $region12: #{tpu_custom_call.1} parent=5 // pred_fallthru
        _
      %p126 = scmp.lt.s32.totalorder %s17, 2
      // Predicated region
      $region13: #{tpu_custom_call.1} parent=5 // pred_check
        %p127 = pneg %p126
      $region14: #{tpu_custom_call.1} parent=5 // pred_check_branch
        %129 = sbr.rel (%p127) target = $region16
      $region15: #{tpu_custom_call.1} parent=5 // pred_region
        // Predicated region
        $region17: #{tpu_custom_call.1} parent=15 // pred_check
          %p130 = pneg %p51
        $region18: #{tpu_custom_call.1} parent=15 // pred_check_branch
          %132 = sbr.rel (%p130) target = $region20
        $region19: #{tpu_custom_call.1} parent=15 // pred_region
          %s133 = sand.u32 %s41, 1
          %s134 = scalar_lea.sflag [#allocation4], %s133
          %s135 = sand.u32 %s41, 1
          %s136 = smul.addr %s135, 8
          %s137 = scalar_lea.vmem [#allocation3], %s136
          %s138 = sadd.s32 %s24, %s25
          %s140 = ssub.s32 128, 128
          %141 = vsyncadd %s134, %s140
          %s142 = smul.addr %s138, 128
          %s143 = scalar_lea.hbm %s0, %s142
          %s145 = sshll.u32 %s137, 4
          %s146 = int_to_ptr.vmem [resolvable:$true] %s145
          %148 = dma.hbm_to_vmem [thread:$0]  %s143, 128, %s146, %s134
        $region20: #{tpu_custom_call.1} parent=15 // pred_fallthru
          _
        // Predicated region
        $region21: #{tpu_custom_call.1} parent=15 // pred_check
          %p149 = pneg %p79
        $region22: #{tpu_custom_call.1} parent=15 // pred_check_branch
          %151 = sbr.rel (%p149) target = $region24
        $region23: #{tpu_custom_call.1} parent=15 // pred_region
          %s152 = sand.u32 %s69, 1
          %s153 = scalar_lea.sflag [#allocation7], %s152
          %s154 = sand.u32 %s69, 1
          %s155 = smul.addr %s154, 8
          %s156 = scalar_lea.vmem [#allocation6], %s155
          %s157 = sadd.s32 %s24, %s25
          %s159 = ssub.s32 128, 128
          %160 = vsyncadd %s153, %s159
          %s161 = smul.addr %s157, 128
          %s162 = scalar_lea.hbm %s1, %s161
          %s164 = sshll.u32 %s156, 4
          %s165 = int_to_ptr.vmem [resolvable:$true] %s164
          %167 = dma.hbm_to_vmem [thread:$0]  %s162, 128, %s165, %s153
        $region24: #{tpu_custom_call.1} parent=15 // pred_fallthru
          _
      $region16: #{tpu_custom_call.1} parent=5 // pred_fallthru
        _
      %p168 = scmp.le.s32.totalorder 1, %s17
      %p169 = scmp.lt.s32.totalorder %s17, 3
      %p170 = pnand %p168, %p169
      %p171 = pneg %p170
      // Predicated region
      $region25: #{tpu_custom_call.1} parent=5 // pred_check
        _
      $region26: #{tpu_custom_call.1} parent=5 // pred_check_branch
        %173 = sbr.rel (%p170) target = $region28
      $region27: #{tpu_custom_call.1} parent=5 // pred_region
        %s174 = ssub.s32 %s17, 1
        %s175 = sand.u32 %s44, 1
        %s176 = scalar_lea.sflag [#allocation4], %s175
        %s177 = sand.u32 %s44, 1
        %s178 = smul.addr %s177, 8
        %s179 = scalar_lea.vmem [#allocation3], %s178
        // Predicated region
        $region29: #{tpu_custom_call.1} parent=27 // pred_check
          %p180 = pneg %p57
        $region30: #{tpu_custom_call.1} parent=27 // pred_check_branch
          %182 = sbr.rel (%p180) target = $region32
        $region31: #{tpu_custom_call.1} parent=27 // pred_region
          %183 = dma.done %s176, 128
        $region32: #{tpu_custom_call.1} parent=27 // pred_fallthru
          _
        %s184 = sand.u32 %s72, 1
        %s185 = scalar_lea.sflag [#allocation7], %s184
        %s186 = sand.u32 %s72, 1
        %s187 = smul.addr %s186, 8
        %s188 = scalar_lea.vmem [#allocation6], %s187
        // Predicated region
        $region33: #{tpu_custom_call.1} parent=27 // pred_check
          %p189 = pneg %p85
        $region34: #{tpu_custom_call.1} parent=27 // pred_check_branch
          %191 = sbr.rel (%p189) target = $region36
        $region35: #{tpu_custom_call.1} parent=27 // pred_region
          %192 = dma.done %s185, 128
        $region36: #{tpu_custom_call.1} parent=27 // pred_fallthru
          _
        %s193 = sand.u32 %s44, 1
        %s194 = scalar_lea.sflag [#allocation4], %s193
        %s195 = sand.u32 %s44, 1
        %s196 = smul.addr %s195, 8
        %s197 = scalar_lea.vmem [#allocation3], %s196
        %p198 = pneg %p57
        %p199 = pneg %p54
        %s200 = sand.u32 %s72, 1
        %s201 = scalar_lea.sflag [#allocation7], %s200
        %s202 = sand.u32 %s72, 1
        %s203 = smul.addr %s202, 8
        %s204 = scalar_lea.vmem [#allocation6], %s203
        %p205 = pneg %p85
        %p206 = pneg %p82
        %p207 = pneg %p111
        %p208 = pneg %p108
        %s209 = sand.u32 %s98, 1
        %s210 = scalar_lea.sflag [#allocation5], %s209
        %s211 = sand.u32 %s98, 1
        %s212 = smul.addr %s211, 8
        %s213 = scalar_lea.vmem [#allocation8], %s212
        %s214 = sadd.s32 %s26, %s27
        %s215 = sadd.s32 %s26, %s27
        %p216 = scmp.eq.s32.totalorder %s27, 0
        // Predicated region
        $region37: #{tpu_custom_call.1} parent=27 // pred_check
          %p217 = pneg %p216
        $region38: #{tpu_custom_call.1} parent=27 // pred_check_branch
          %219 = sbr.rel (%p217) target = $region40
        $region39: #{tpu_custom_call.1} parent=27 // pred_region
          %220 = vst [vmem:[#allocation2] sm:$0xff] 0.0
        $region40: #{tpu_custom_call.1} parent=27 // pred_fallthru
          _
        %v221 = vld [vmem:[%s179] sm:$0xff]
        %v222 = vld [vmem:[%s188] sm:$0xff]
        %v223 = vand.u32 2147483647, %v221
        %v224 = vsub.f32 0.0, %v223
        %v225 = vmul.f32 %v224, 1.442695
        %v226 = vpow.pop %v225
        %v227 = vmax.f32 %v221, 0.0
        %v228 = vmul.f32 %v221, %v222
        %v229 = vsub.f32 %v227, %v228
        %v230 = vadd.f32 %v226, 1.0
        %v231 = vlog2.pop %v230
        %v232 = vmul.f32 %v231, 0.6931472
        %v233 = vmul.f32 -0.5, %v226
        %v234 = vadd.f32 %v233, 1.0
        %v235 = vmul.f32 %v234, %v226
        %v236 = vand.u32 2147483647, %v226
        %vm237 = vcmp.lt.f32.partialorder %v236, 0.0004427343
        %v238 = vsel %vm237, %v235, %v232
        %v239 = vadd.f32 %v229, %v238
        %vm240 = vcmp.ge.f32.partialorder %v221, 0.0
        %vm241 = vcmp.ge.f32.partialorder %v222, 0.5
        %vm242 = vmxor %vm240, %vm241
        %vm243 = vmxor %vm242, 1
        %v244 = vsel %vm243, 1.0, %v226
        %v245 = vadd.f32 %v226, 1.0
        %v246 = vrcp.pop %v245
        %v247 = vmul.f32 %v244, %v246
        %v248 = vsub.f32 1.000001, %v247
        %v249 = vrsqrt.pop %v248
        %v250 = vmul.f32 %v248, %v249
        %vm251 = vcmp.eq.f32.partialorder %v248, inf
        %v252 = vsel %vm251, %v248, %v250
        %vm253 = vcmp.eq.f32.partialorder %v248, 0.0
        %v254 = vand.u32 %v248, 2147483648
        %v255 = vsel %vm253, %v254, %v252
        %v256 = vmul.f32 %v239, %v255
        %v257 = vld [vmem:[#allocation2] sm:$0xff]
        %v258 = vadd.f32 %v256, 0.0
        %v259 = vadd.f32 %v257, %v258
        %260 = vst [vmem:[#allocation2] sm:$0xff] %v259
        // Predicated region
        $region41: #{tpu_custom_call.1} parent=27 // pred_check
          %p261 = pneg %p216
        $region42: #{tpu_custom_call.1} parent=27 // pred_check_branch
          %263 = sbr.rel (%p261) target = $region44
        $region43: #{tpu_custom_call.1} parent=27 // pred_region
          %v264 = vld [vmem:[#allocation2] sm:$0xff]
          %265 = vst [vmem:[%s213] sm:$0xff] %v264
        $region44: #{tpu_custom_call.1} parent=27 // pred_fallthru
          _
        %s266 = sand.u32 %s98, 1
        %s267 = scalar_lea.sflag [#allocation5], %s266
        %s268 = sand.u32 %s98, 1
        %s269 = smul.addr %s268, 8
        %s270 = scalar_lea.vmem [#allocation8], %s269
        // Predicated region
        $region45: #{tpu_custom_call.1} parent=27 // pred_check
          %p271 = pneg %p108
        $region46: #{tpu_custom_call.1} parent=27 // pred_check_branch
          %273 = sbr.rel (%p271) target = $region48
        $region47: #{tpu_custom_call.1} parent=27 // pred_region
          %s275 = ssub.s32 128, 128
          %276 = vsyncadd %s267, %s275
          %s277 = smul.addr %s26, 128
          %s278 = scalar_lea.hbm %s2, %s277
          %s280 = sshll.u32 %s270, 4
          %s281 = int_to_ptr.vmem [resolvable:$true] %s280
          %283 = dma.vmem_to_hbm [thread:$0]  %s281, 128, %s278, %s267
        $region48: #{tpu_custom_call.1} parent=27 // pred_fallthru
          _
      $region28: #{tpu_custom_call.1} parent=5 // pred_fallthru
        _
      %p284 = scmp.le.s32.totalorder 2, %s17
      // Predicated region
      $region49: #{tpu_custom_call.1} parent=5 // pred_check
        %p285 = pneg %p284
      $region50: #{tpu_custom_call.1} parent=5 // pred_check_branch
        %287 = sbr.rel (%p285) target = $region52
      $region51: #{tpu_custom_call.1} parent=5 // pred_region
        %s288 = ssub.s32 %s17, 2
        // Predicated region
        $region53: #{tpu_custom_call.1} parent=51 // pred_check
          %p289 = pneg %p114
        $region54: #{tpu_custom_call.1} parent=51 // pred_check_branch
          %291 = sbr.rel (%p289) target = $region56
        $region55: #{tpu_custom_call.1} parent=51 // pred_region
          %s292 = sand.u32 %s99, 1
          %s293 = scalar_lea.sflag [#allocation5], %s292
          %s294 = sand.u32 %s99, 1
          %s295 = smul.addr %s294, 8
          %s296 = scalar_lea.vmem [#allocation8], %s295
          %297 = dma.done %s293, 128
        $region56: #{tpu_custom_call.1} parent=51 // pred_fallthru
          _
      $region52: #{tpu_custom_call.1} parent=5 // pred_fallthru
        _
    $region6: #{tpu_custom_call.1} parent=1 // loop_footer
      %s21 = sadd.s32 1, %s17
    $region7: #{tpu_custom_call.1} parent=1 // loop_footer_branch
      %16 = sbr.rel target = $region3
    $region8: #{tpu_custom_call.1} parent=1 // loop_exit
      _
    %298 = vsyncpa [#allocation4], 1
    %s299 = scalar_lea.sflag [#allocation4], 1
    %300 = vsyncpa %s299, 1
    %301 = vsyncpa [#allocation7], 1
    %s302 = scalar_lea.sflag [#allocation7], 1
    %303 = vsyncpa %s302, 1
    %304 = vsyncpa [#allocation5], 1
    %s305 = scalar_lea.sflag [#allocation5], 1
    %306 = vsyncpa %s305, 1

</llo_original>
